<compile_context>
chip_gen: v7x
topology: tpu7x:2x2x1
jax: 0.10.0
libtpu: 0.0.40
codegen_flags: <defaults>
</compile_context>

<pallas_src>
import functools
import math

import jax
import jax.numpy as jnp
from jax.experimental import pallas as pl
from jax.experimental.pallas import tpu as pltpu


# --------------------------------------------------------------------------
# Kernel
# --------------------------------------------------------------------------
def _linear_kernel(*refs, has_bias, has_lora, scaling):
    """One (tm, tn) output tile, accumulating over the K grid axis.

    Ref order: x(tm,tk) bf16, w(tk,tn) bf16, [bias(1,tn) f32],
               [lx(tm,r) f32, lora_b(r,tn) f32],
               out(tm,tn), acc(tm,tn) f32 scratch.
    """
    idx = 0
    x_ref = refs[idx]; idx += 1
    w_ref = refs[idx]; idx += 1
    b_ref = None
    if has_bias:
        b_ref = refs[idx]; idx += 1
    lx_ref = bl_ref = None
    if has_lora:
        lx_ref = refs[idx]; idx += 1
        bl_ref = refs[idx]; idx += 1
    o_ref = refs[idx]; idx += 1
    acc_ref = refs[idx]

    k = pl.program_id(2)
    nk = pl.num_programs(2)

    @pl.when(k == 0)
    def _init():
        acc_ref[...] = jnp.zeros_like(acc_ref)

    # Main-path partial product on the MXU, f32 accumulation.
    acc_ref[...] += jnp.dot(x_ref[...], w_ref[...],
                            preferred_element_type=jnp.float32)

    @pl.when(k == nk - 1)
    def _epilogue():
        y = acc_ref[...]
        if has_lora:
            # (tm, r) precomputed down-projection; scale the tiny intermediate
            # and do the up-projection entirely in f32.
            lx = lx_ref[...] * jnp.float32(scaling)
            y = y + jnp.dot(lx, bl_ref[...], preferred_element_type=jnp.float32)
        if has_bias:
            y = y + b_ref[...]                      # (1, tn) f32 broadcast
        o_ref[...] = y.astype(o_ref.dtype)


# --------------------------------------------------------------------------
# Chip-aware tiling helpers
# --------------------------------------------------------------------------
def _round_up(a, b):
    return ((a + b - 1) // b) * b


def _chip_budget():
    """Tile / VMEM-limit budget derived from the local chip's VMEM capacity."""
    vmem_cap = None
    try:
        vmem_cap = getattr(pltpu.get_tpu_info(), "vmem_capacity_bytes", None)
    except Exception:
        vmem_cap = None
    if vmem_cap is not None and vmem_cap >= 96 * 1024 * 1024:
        # v5e / v6e: 128 MiB VMEM -> big tiles, 64 MiB scoped budget.
        return dict(max_tm=512, max_tn=1024, max_tk=1024,
                    vmem_limit=64 * 1024 * 1024)
    # v7x (64 MiB VMEM) or unknown: same tile shapes fit fine in bf16,
    # but cap the scoped budget at 48 MiB.
    return dict(max_tm=512, max_tn=1024, max_tk=1024,
                vmem_limit=48 * 1024 * 1024)


def _pick_tile(dim, max_tile):
    """(tile, padded_dim) for a lane-facing (last-dim) axis.

    If dim fits in one tile we use the full extent (allowed by the (8,128)
    rule).  Otherwise tiles are 128-aligned; if no 128-multiple divides dim we
    pad (one-time, at parameter prep) to the smallest-waste 128-aligned tile.
    """
    if dim <= max_tile:
        return dim, dim
    cands = list(range(max_tile, 127, -128))        # 128-aligned tiles
    best = min(cands, key=lambda c: (_round_up(dim, c) - dim, -c))
    return best, _round_up(dim, best)


def _pick_tm(m, max_tm):
    """(tm, padded_M).  Prefers divisors of M; otherwise minimal padding."""
    if m <= max_tm:
        tm = max(8, _round_up(m, 8))                # single sublane-aligned tile
        return tm, tm
    cands = [c for c in (512, 256, 128, 64, 32, 16) if c <= max_tm]
    for c in cands:
        if m % c == 0:
            return c, m
    best = min(cands, key=lambda c: (_round_up(m, c) - m, -c))
    return best, _round_up(m, best)


# --------------------------------------------------------------------------
# One-time parameter preparation (no per-call transposes / repacking)
# --------------------------------------------------------------------------
def prepare_linear_params(weight, bias=None, lora_a=None, lora_b=None,
                          scaling=1.0, compute_dtype=jnp.bfloat16):
    """Re-layout parameters once: K-major, 128-aligned padding, bf16 MXU feed.

    weight: [N, K]; bias: [N]; lora_a: [r, K]; lora_b: [N, r].
    """
    N, K = weight.shape
    budget = _chip_budget()
    tn, Np = _pick_tile(N, budget["max_tn"])
    tk, Kp = _pick_tile(K, budget["max_tk"])

    w_kn = jnp.transpose(weight)                    # [K, N], one-time
    if (Kp, Np) != (K, N):
        w_kn = jnp.pad(w_kn, ((0, Kp - K), (0, Np - N)))
    w_kn = w_kn.astype(compute_dtype)

    params = dict(w_kn=w_kn, K=K, N=N, Kp=Kp, Np=Np, tk=tk, tn=tn,
                  compute_dtype=compute_dtype, scaling=float(scaling),
                  max_tm=budget["max_tm"], vmem_limit=budget["vmem_limit"],
                  bias=None, a_kr=None, b_rn=None, r=0)

    if bias is not None:
        b = bias.astype(jnp.float32).reshape(1, N)
        if Np != N:
            b = jnp.pad(b, ((0, 0), (0, Np - N)))
        params["bias"] = b

    if lora_a is not None and lora_b is not None:
        r = lora_a.shape[0]
        a_kr = jnp.transpose(lora_a)                # [K, r]
        if Kp != K:
            a_kr = jnp.pad(a_kr, ((0, Kp - K), (0, 0)))
        params["a_kr"] = a_kr.astype(compute_dtype)
        b_rn = jnp.transpose(lora_b).astype(jnp.float32)  # [r, N], kept f32
        if Np != N:
            b_rn = jnp.pad(b_rn, ((0, 0), (0, Np - N)))
        params["b_rn"] = b_rn
        params["r"] = r

    return params


# --------------------------------------------------------------------------
# Forward
# --------------------------------------------------------------------------
def replicated_linear(x, params):
    """x: [..., K] -> [..., N] using parameters from prepare_linear_params."""
    lead = x.shape[:-1]
    K, N = params["K"], params["N"]
    Kp, Np = params["Kp"], params["Np"]
    tk, tn = params["tk"], params["tn"]
    cdt = params["compute_dtype"]

    M = int(math.prod(lead)) if lead else 1
    tm, Mp = _pick_tm(M, params["max_tm"])

    x2 = x.reshape(M, K).astype(cdt)
    if (Mp, Kp) != (M, K):
        x2 = jnp.pad(x2, ((0, Mp - M), (0, Kp - K)))

    has_bias = params["bias"] is not None
    has_lora = params["a_kr"] is not None
    nk = Kp // tk
    grid = (Mp // tm, Np // tn, nk)

    args = [x2, params["w_kn"]]

    # Decode path: deepen the weight pipeline so the HBM stream stays full.
    def _w_spec():
        if M <= 64 and nk >= 3:
            try:
                return pl.BlockSpec((tk, tn), lambda i, j, k: (k, j),
                                    pipeline_mode=pl.Buffered(3))
            except Exception:
                pass
        return pl.BlockSpec((tk, tn), lambda i, j, k: (k, j))

    in_specs = [
        pl.BlockSpec((tm, tk), lambda i, j, k: (i, k)),
        _w_spec(),
    ]
    if has_bias:
        args.append(params["bias"])
        in_specs.append(pl.BlockSpec((1, tn), lambda i, j, k: (0, j)))
    if has_lora:
        r = params["r"]
        # LoRA down-projection hoisted out of the kernel: tiny (Mp, r) f32.
        lx = jnp.dot(x2, params["a_kr"], preferred_element_type=jnp.float32)
        args += [lx, params["b_rn"]]
        in_specs += [
            pl.BlockSpec((tm, r), lambda i, j, k: (i, 0)),
            pl.BlockSpec((r, tn), lambda i, j, k: (0, j)),
        ]

    kernel = functools.partial(_linear_kernel, has_bias=has_bias,
                               has_lora=has_lora, scaling=params["scaling"])

    out = pl.pallas_call(
        kernel,
        out_shape=jax.ShapeDtypeStruct((Mp, Np), x.dtype),
        grid_spec=pltpu.PrefetchScalarGridSpec(
            num_scalar_prefetch=0,
            grid=grid,
            in_specs=in_specs,
            out_specs=pl.BlockSpec((tm, tn), lambda i, j, k: (i, j)),
            scratch_shapes=[pltpu.VMEM((tm, tn), jnp.float32)],
        ),
        compiler_params=pltpu.CompilerParams(
            dimension_semantics=("parallel", "parallel", "arbitrary"),
            vmem_limit_bytes=params["vmem_limit"],
        ),
    )(*args)

    if (Mp, Np) != (M, N):
        out = out[:M, :N]
    return out.reshape(*lead, N)


# --------------------------------------------------------------------------
# Demo / self-check
# --------------------------------------------------------------------------
if __name__ == "__main__":
    # Small synthetic config: batch=2, seq=8, input_size=32, output_size=64, rank=4
    B, S, K, N, r = 2, 8, 32, 64, 4
    lora_alpha = 2.0
    scaling = lora_alpha / r

    key = jax.random.PRNGKey(0)
    k1, k2, k3, k4, k5 = jax.random.split(key, 5)
    x = jax.random.normal(k1, (B, S, K), jnp.float32)
    weight = jax.random.normal(k2, (N, K), jnp.float32) * 0.1
    bias = jax.random.normal(k3, (N,), jnp.float32) * 0.1
    lora_a = jax.random.normal(k4, (r, K), jnp.float32) * 0.1
    # NOTE: PyTorch inits lora_b to zeros; random here so the LoRA path is exercised.
    lora_b = jax.random.normal(k5, (N, r), jnp.float32) * 0.1

    # One-time parameter prep (K-major layout, padding, bf16 cast).
    params_full = prepare_linear_params(weight, bias, lora_a, lora_b, scaling)
    params_plain = prepare_linear_params(weight)

    # Full path: bias + LoRA.
    y = jax.block_until_ready(replicated_linear(x, params_full))
    # Plain path: F.linear(x, weight, None).
    y2 = jax.block_until_ready(replicated_linear(x, params_plain))

    # Reference with the same bf16 operand rounding (f32 accumulation).
    xc = x.astype(jnp.bfloat16).astype(jnp.float32)
    wc = weight.astype(jnp.bfloat16).astype(jnp.float32)
    ac = lora_a.astype(jnp.bfloat16).astype(jnp.float32)
    ref = xc @ wc.T + bias + scaling * ((xc @ ac.T) @ lora_b.T)
    ref2 = xc @ wc.T

    assert y.shape == (B, S, N) and y2.shape == (B, S, N)
    assert jnp.allclose(y, ref, atol=2e-2, rtol=2e-2), "LoRA+bias path mismatch"
    assert jnp.allclose(y2, ref2, atol=2e-2, rtol=2e-2), "plain path mismatch"
    print("KERNEL_OK")
</pallas_src>

<mosaic_0001>
module attributes {stable_mosaic.version = 11 : i64} {
  func.func @_linear_kernel(%arg0: i32, %arg1: i32, %arg2: i32, %arg3: memref<16x32xbf16, #tpu.memory_space<vmem>>, %arg4: memref<32x64xbf16, #tpu.memory_space<vmem>>, %arg5: memref<1x64xf32, #tpu.memory_space<vmem>>, %arg6: memref<16x4xf32, #tpu.memory_space<vmem>>, %arg7: memref<4x64xf32, #tpu.memory_space<vmem>>, %arg8: memref<16x64xf32, #tpu.memory_space<vmem>>, %arg9: memref<16x64xf32, #tpu.memory_space<vmem>>) attributes {dimension_semantics = [#tpu.dimension_semantics<parallel>, #tpu.dimension_semantics<parallel>, #tpu.dimension_semantics<arbitrary>], iteration_bounds = array<i64: 1, 1, 1>, scalar_prefetch = 0 : i64, scratch_operands = 1 : i64, tpu.core_type = #tpu.core_type<tc>, window_params = [{transform_indices = @transform_0, window_bounds = array<i64: 16, 32>}, {transform_indices = @transform_1, window_bounds = array<i64: 32, 64>}, {transform_indices = @transform_2, window_bounds = array<i64: 1, 64>}, {transform_indices = @transform_3, window_bounds = array<i64: 16, 4>}, {transform_indices = @transform_4, window_bounds = array<i64: 4, 64>}, {transform_indices = @transform_5, window_bounds = array<i64: 16, 64>}]} {
    %c0_i32 = arith.constant 0 : i32
    %0 = arith.cmpi eq, %arg2, %c0_i32 : i32
    %1 = arith.extui %0 : i1 to i32
    %c0_i32_0 = arith.constant 0 : i32
    %2 = arith.cmpi ne, %1, %c0_i32_0 : i32
    scf.if %2 {
      %cst_10 = arith.constant 0.000000e+00 : f32
      %12 = vector.broadcast %cst_10 : f32 to vector<16x64xf32>
      %c0_11 = arith.constant 0 : index
      %c0_12 = arith.constant 0 : index
      %13 = vector.load %arg9[%c0_11, %c0_12] : memref<16x64xf32, #tpu.memory_space<vmem>>, vector<16x64xf32>
      tpu.vector_store %arg9[%c0_11, %c0_12], %12 {strides = array<i32>} : memref<16x64xf32, #tpu.memory_space<vmem>>, vector<16x64xf32>,
    } else {
    }
    %c0 = arith.constant 0 : index
    %c0_1 = arith.constant 0 : index
    %3 = vector.load %arg9[%c0, %c0_1] : memref<16x64xf32, #tpu.memory_space<vmem>>, vector<16x64xf32>
    %c0_2 = arith.constant 0 : index
    %c0_3 = arith.constant 0 : index
    %4 = vector.load %arg3[%c0_2, %c0_3] : memref<16x32xbf16, #tpu.memory_space<vmem>>, vector<16x32xbf16>
    %c0_4 = arith.constant 0 : index
    %c0_5 = arith.constant 0 : index
    %5 = vector.load %arg4[%c0_4, %c0_5] : memref<32x64xbf16, #tpu.memory_space<vmem>>, vector<32x64xbf16>
    %cst = arith.constant dense<0.000000e+00> : vector<16x64xf32>
    %6 = tpu.matmul %4, %5, %cst {dimension_numbers = #tpu.dot_dimension_numbers<[1], [0], [0], [1], [0, 0, 1, 1], [], []>} : vector<16x32xbf16>, vector<32x64xbf16>, vector<16x64xf32> -> vector<16x64xf32>
    %7 = arith.addf %3, %6 : vector<16x64xf32>
    %c0_6 = arith.constant 0 : index
    %c0_7 = arith.constant 0 : index
    %8 = vector.load %arg9[%c0_6, %c0_7] : memref<16x64xf32, #tpu.memory_space<vmem>>, vector<16x64xf32>
    tpu.vector_store %arg9[%c0_6, %c0_7], %7 {strides = array<i32>} : memref<16x64xf32, #tpu.memory_space<vmem>>, vector<16x64xf32>,
    %c0_i32_8 = arith.constant 0 : i32
    %9 = arith.cmpi eq, %arg2, %c0_i32_8 : i32
    %10 = arith.extui %9 : i1 to i32
    %c0_i32_9 = arith.constant 0 : i32
    %11 = arith.cmpi ne, %10, %c0_i32_9 : i32
    scf.if %11 {
      %c0_10 = arith.constant 0 : index
      %c0_11 = arith.constant 0 : index
      %12 = vector.load %arg9[%c0_10, %c0_11] : memref<16x64xf32, #tpu.memory_space<vmem>>, vector<16x64xf32>
      %c0_12 = arith.constant 0 : index
      %c0_13 = arith.constant 0 : index
      %13 = vector.load %arg6[%c0_12, %c0_13] : memref<16x4xf32, #tpu.memory_space<vmem>>, vector<16x4xf32>
      %cst_14 = arith.constant 5.000000e-01 : f32
      %14 = vector.broadcast %cst_14 : f32 to vector<16x4xf32>
      %15 = arith.mulf %13, %14 : vector<16x4xf32>
      %c0_15 = arith.constant 0 : index
      %c0_16 = arith.constant 0 : index
      %16 = vector.load %arg7[%c0_15, %c0_16] : memref<4x64xf32, #tpu.memory_space<vmem>>, vector<4x64xf32>
      %cst_17 = arith.constant dense<0.000000e+00> : vector<16x64xf32>
      %17 = tpu.matmul %15, %16, %cst_17 {dimension_numbers = #tpu.dot_dimension_numbers<[1], [0], [0], [1], [0, 0, 1, 1], [], []>} : vector<16x4xf32>, vector<4x64xf32>, vector<16x64xf32> -> vector<16x64xf32>
      %18 = arith.addf %12, %17 : vector<16x64xf32>
      %c0_18 = arith.constant 0 : index
      %c0_19 = arith.constant 0 : index
      %19 = vector.load %arg5[%c0_18, %c0_19] : memref<1x64xf32, #tpu.memory_space<vmem>>, vector<1x64xf32>
      %20 = vector.broadcast %19 : vector<1x64xf32> to vector<16x64xf32>
      %21 = arith.addf %18, %20 : vector<16x64xf32>
      %c0_20 = arith.constant 0 : index
      %c0_21 = arith.constant 0 : index
      %22 = vector.load %arg8[%c0_20, %c0_21] : memref<16x64xf32, #tpu.memory_space<vmem>>, vector<16x64xf32>
      tpu.vector_store %arg8[%c0_20, %c0_21], %21 {strides = array<i32>} : memref<16x64xf32, #tpu.memory_space<vmem>>, vector<16x64xf32>,
    } else {
    }
    return
  }
  func.func @transform_0(%arg0: i32, %arg1: i32, %arg2: i32) -> (i32, i32) {
    %c0_i32 = arith.constant 0 : i32
    return %arg0, %arg2 : i32, i32
  }
  func.func @transform_1(%arg0: i32, %arg1: i32, %arg2: i32) -> (i32, i32) {
    %c0_i32 = arith.constant 0 : i32
    return %arg2, %arg1 : i32, i32
  }
  func.func @transform_2(%arg0: i32, %arg1: i32, %arg2: i32) -> (i32, i32) {
    %c0_i32 = arith.constant 0 : i32
    %c0_i32_0 = arith.constant 0 : i32
    return %c0_i32, %arg1 : i32, i32
  }
  func.func @transform_3(%arg0: i32, %arg1: i32, %arg2: i32) -> (i32, i32) {
    %c0_i32 = arith.constant 0 : i32
    %c0_i32_0 = arith.constant 0 : i32
    return %arg0, %c0_i32 : i32, i32
  }
  func.func @transform_4(%arg0: i32, %arg1: i32, %arg2: i32) -> (i32, i32) {
    %c0_i32 = arith.constant 0 : i32
    %c0_i32_0 = arith.constant 0 : i32
    return %c0_i32, %arg1 : i32, i32
  }
  func.func @transform_5(%arg0: i32, %arg1: i32, %arg2: i32) -> (i32, i32) {
    %c0_i32 = arith.constant 0 : i32
    return %arg0, %arg1 : i32, i32
  }
}

</mosaic_0001>

<llo_original>
// kernel: tpu_custom_call.1
$region0: #{tpu_custom_call.1}
  #allocation0 [shape = 'u32[]', space=smem, size = 0x4, offset = 0x4, fixed_abs, tag = 'smem constant byte address 0x4 - core index']
  #allocation1 [shape = 'u32[144,128]{1,0:T(1,128)}', space=vmem, size = 0x12000, scoped, tag = 'internal scratch']
  #allocation2 [shape = 'f32[16,64]{1,0:T(8,128)}', space=vmem, size = 0x2000, scoped, tag = 'scratch operand']
  %s0 = inlined_call_operand.hbm [shape: bf16[16,32], index: 0, kind: input, shape index: {}]
  %s1 = inlined_call_operand.vmem [shape: bf16[32,64], index: 1, kind: input, shape index: {}]
  %s2 = inlined_call_operand.vmem [shape: f32[1,64], index: 2, kind: input, shape index: {}]
  %s3 = inlined_call_operand.vmem [shape: f32[16,4], index: 3, kind: input, shape index: {}]
  %s4 = inlined_call_operand.vmem [shape: f32[4,64], index: 4, kind: input, shape index: {}]
  %s5 = inlined_call_operand.hbm [shape: f32[16,64], index: 5, kind: output, shape index: {}]
  %s6 = sld [smem:[#allocation0]]
  $region42: #{tpu_custom_call.1} parent=0
    _
  %s8 = ssub.s32 1, %s6
  %s9 = scalar_select 0, %s8, %s6
  $region1: #{tpu_custom_call.1} parent=0
    #allocation3 [shape = 'u8[4096]{0}', space=vmem, size = 0x1000, scoped, tag = 'input window, operand 0, single buffered']
    #allocation4 [shape = 's32[1]{0}', space=sflag, size = 0x4, scoped, tag = 'scoped memory for tpu_custom_call.1']
    #allocation5 [shape = 's32[1]{0}', space=sflag, size = 0x4, scoped, tag = 'scoped memory for tpu_custom_call.1']
    #allocation6 [shape = 'u8[8192]{0}', space=vmem, size = 0x2000, scoped, tag = 'output window, operand 0, single buffered']
    %10 = vsyncpa [#allocation4], 0
    %11 = vsyncpa [#allocation5], 0
    // Predicated region
    $region2: #{tpu_custom_call.1} parent=1 // pred_check
      _
    $region3: #{tpu_custom_call.1} parent=1 // pred_check_branch
      %13 = sbr.rel (0) target = $region5
    $region4: #{tpu_custom_call.1} parent=1 // pred_region
      %s15 = ssub.s32 128, 128
      %16 = vsyncadd [#allocation4], %s15
      %s17 = sshll.u32 [#allocation3], 4
      %s18 = int_to_ptr.vmem [resolvable:$true] %s17
      %23 = dma.hbm_to_vmem [thread:$0]  %s0, 128, %s18, [#allocation4], 64, 64, 4
    $region5: #{tpu_custom_call.1} parent=1 // pred_fallthru
      _
    // Predicated region
    $region6: #{tpu_custom_call.1} parent=1 // pred_check
      _
    $region7: #{tpu_custom_call.1} parent=1 // pred_check_branch
      %25 = sbr.rel (0) target = $region9
    $region8: #{tpu_custom_call.1} parent=1 // pred_region
      _
    $region9: #{tpu_custom_call.1} parent=1 // pred_fallthru
      _
    // Predicated region
    $region10: #{tpu_custom_call.1} parent=1 // pred_check
      _
    $region11: #{tpu_custom_call.1} parent=1 // pred_check_branch
      %27 = sbr.rel (0) target = $region13
    $region12: #{tpu_custom_call.1} parent=1 // pred_region
      _
    $region13: #{tpu_custom_call.1} parent=1 // pred_fallthru
      _
    // Predicated region
    $region14: #{tpu_custom_call.1} parent=1 // pred_check
      _
    $region15: #{tpu_custom_call.1} parent=1 // pred_check_branch
      %29 = sbr.rel (0) target = $region17
    $region16: #{tpu_custom_call.1} parent=1 // pred_region
      _
    $region17: #{tpu_custom_call.1} parent=1 // pred_fallthru
      _
    // Predicated region
    $region18: #{tpu_custom_call.1} parent=1 // pred_check
      _
    $region19: #{tpu_custom_call.1} parent=1 // pred_check_branch
      %31 = sbr.rel (0) target = $region21
    $region20: #{tpu_custom_call.1} parent=1 // pred_region
      _
    $region21: #{tpu_custom_call.1} parent=1 // pred_fallthru
      _
    // Predicated region
    $region22: #{tpu_custom_call.1} parent=1 // pred_check
      _
    $region23: #{tpu_custom_call.1} parent=1 // pred_check_branch
      %33 = sbr.rel (0) target = $region25
    $region24: #{tpu_custom_call.1} parent=1 // pred_region
      %34 = dma.done [#allocation4], 128
    $region25: #{tpu_custom_call.1} parent=1 // pred_fallthru
      _
    %p36 = scmp.eq.s32.totalorder 0, 0
    // Predicated region
    $region26: #{tpu_custom_call.1} parent=1 // pred_check
      %p37 = pneg %p36
    $region27: #{tpu_custom_call.1} parent=1 // pred_check_branch
      %39 = sbr.rel (%p37) target = $region29
    $region28: #{tpu_custom_call.1} parent=1 // pred_region
      %vm40 = vcmask 523264
      %41 = vst.msk [vmem:[#allocation2] sm:$0xff] %vm40, 0.0
      %42 = vst.msk [vmem:[#allocation2 + $0x8] sm:$0xff] %vm40, 0.0
    $region29: #{tpu_custom_call.1} parent=1 // pred_fallthru
      _
    %v43 = vld [vmem:[#allocation2] sm:$0xff]
    %v44 = vld [vmem:[#allocation2 + $0x8] sm:$0xff]
    %v45 = vld [vmem:[#allocation3] sm:$0xf]
    %v46 = vld [vmem:[#allocation3 + $0x4] sm:$0xf]
    %v47 = vld [vmem:[%s1] sm:$0xf]
    %v48 = vld [vmem:[%s1 + $0x4] sm:$0xf]
    %v49 = vld [vmem:[%s1 + $0x8] sm:$0xf]
    %v50 = vld [vmem:[%s1 + $0xc] sm:$0xf]
    %v53 = vunpack.c.l.b16 %v45
    %v54 = vunpack.c.l.b16 %v46
    %v55 = vpack.c.b16 %v54, %v53
    %v60 = vunpack.c.l.b16 %v47
    %v61 = vunpack.c.l.b16 %v48
    %v62 = vunpack.c.l.b16 %v49
    %v63 = vunpack.c.l.b16 %v50
    %v64 = vpack.c.b16 %v61, %v60
    %v65 = vpack.c.b16 %v63, %v62
    %vm68 = vcmask 261120
    %v70 = vsel %vm68, %v55, 0
    %72 = vmatprep.subr.bf16.mxu0 0
    %73 = vmatpush1.bf16.msra.mxu0 %v64
    %74 = vmatprep.subr.bf16.mxu0 0
    %75 = vmatpush1.bf16.msra.mxu0 %v65
    %76 = vmatprep.subr.bf16.mxu0 0
    %77 = vmatpush1.bf16.msra.mxu0 0
    %78 = vmatprep.subr.bf16.mxu0 0
    %79 = vmatpush1.bf16.msra.mxu0 0
    %80 = vmatprep.subr.bf16.mxu0 0
    %81 = vmatpush1.bf16.msra.mxu0 0
    %82 = vmatprep.subr.bf16.mxu0 0
    %83 = vmatpush1.bf16.msra.mxu0 0
    %84 = vmatprep.subr.bf16.mxu0 0
    %85 = vmatpush1.bf16.msra.mxu0 0
    %86 = vmatprep.subr.bf16.mxu0 0
    %87 = vmatpush1.bf16.msra.mxu0 0
    %88 = vmatprep.subr.bf16.mxu0 0
    %89 = vmatpush1.bf16.msra.mxu0 0
    %90 = vmatprep.subr.bf16.mxu0 0
    %91 = vmatpush1.bf16.msra.mxu0 0
    %92 = vmatprep.subr.bf16.mxu0 0
    %93 = vmatpush1.bf16.msra.mxu0 0
    %94 = vmatprep.subr.bf16.mxu0 0
    %95 = vmatpush1.bf16.msra.mxu0 0
    %96 = vmatprep.subr.bf16.mxu0 0
    %97 = vmatpush1.bf16.msra.mxu0 0
    %98 = vmatprep.subr.bf16.mxu0 0
    %99 = vmatpush1.bf16.msra.mxu0 0
    %100 = vmatprep.subr.bf16.mxu0 0
    %101 = vmatpush1.bf16.msra.mxu0 0
    %102 = vmatprep.subr.bf16.mxu0 0
    %103 = vmatpush1.bf16.msra.mxu0 0
    %104 = vmatprep.mubr.bf16.mxu0 0
    %105 = vmatmul.mubr.bf16.gmra.mrb[0].mxu0 %v70
    %v106 = vpop.f32.mrb[0].mxu0
    %v107 = vadd.f32 0.0, %v106
    %v108 = vpop.f32.mrb[0].mxu0
    %v109 = vpop.f32.mrb[0].mxu0
    %v110 = vadd.f32 0.0, %v109
    %v111 = vpop.f32.mrb[0].mxu0
    %112 = vdwg.mxu0
    %v113 = vadd.f32 %v43, %v107
    %v114 = vadd.f32 %v44, %v110
    %vm115 = vcmask 523264
    %116 = vst.msk [vmem:[#allocation2] sm:$0xff] %vm115, %v113
    %117 = vst.msk [vmem:[#allocation2 + $0x8] sm:$0xff] %vm115, %v114
    // Predicated region
    $region30: #{tpu_custom_call.1} parent=1 // pred_check
      %p118 = pneg %p36
    $region31: #{tpu_custom_call.1} parent=1 // pred_check_branch
      %120 = sbr.rel (%p118) target = $region33
    $region32: #{tpu_custom_call.1} parent=1 // pred_region
      %v121 = vld [vmem:[#allocation2] sm:$0xff]
      %v122 = vld [vmem:[#allocation2 + $0x8] sm:$0xff]
      %v123 = vld [vmem:[%s3] sm:$0xff]
      %v124 = vld [vmem:[%s3 + $0x8] sm:$0xff]
      %v125 = vmul.f32 %v123, 0.5
      %v126 = vmul.f32 %v124, 0.5
      %v127 = vld [vmem:[%s4] sm:$0xf]
      %vm128 = vcmask 31744
      %v130 = vsel %vm128, %v125, 0
      %v133 = vsel %vm128, %v126, 0
      %vm135 = vcmask 1043456
      %v137 = vsel %vm135, %v127, 0
      %139 = vmatprep.subr.mxu0 0.0
      %140 = vmatpush1.msra.mxu0 %v137
      %141 = vmatprep.subr.mxu0 0.0
      %142 = vmatpush1.msra.mxu0 0.0
      %143 = vmatprep.subr.mxu0 0.0
      %144 = vmatpush1.msra.mxu0 0.0
      %145 = vmatprep.subr.mxu0 0.0
      %146 = vmatpush1.msra.mxu0 0.0
      %147 = vmatprep.subr.mxu0 0.0
      %148 = vmatpush1.msra.mxu0 0.0
      %149 = vmatprep.subr.mxu0 0.0
      %150 = vmatpush1.msra.mxu0 0.0
      %151 = vmatprep.subr.mxu0 0.0
      %152 = vmatpush1.msra.mxu0 0.0
      %153 = vmatprep.subr.mxu0 0.0
      %154 = vmatpush1.msra.mxu0 0.0
      %155 = vmatprep.subr.mxu0 0.0
      %156 = vmatpush1.msra.mxu0 0.0
      %157 = vmatprep.subr.mxu0 0.0
      %158 = vmatpush1.msra.mxu0 0.0
      %159 = vmatprep.subr.mxu0 0.0
      %160 = vmatpush1.msra.mxu0 0.0
      %161 = vmatprep.subr.mxu0 0.0
      %162 = vmatpush1.msra.mxu0 0.0
      %163 = vmatprep.subr.mxu0 0.0
      %164 = vmatpush1.msra.mxu0 0.0
      %165 = vmatprep.subr.mxu0 0.0
      %166 = vmatpush1.msra.mxu0 0.0
      %167 = vmatprep.subr.mxu0 0.0
      %168 = vmatpush1.msra.mxu0 0.0
      %169 = vmatprep.subr.mxu0 0.0
      %170 = vmatpush1.msra.mxu0 0.0
      %171 = vmatprep.subr.mxu0 0.0
      %172 = vmatpush1.msra.mxu0 0.0
      %173 = vmatprep.subr.mxu0 0.0
      %174 = vmatpush1.msra.mxu0 0.0
      %175 = vmatprep.subr.mxu0 0.0
      %176 = vmatpush1.msra.mxu0 0.0
      %177 = vmatprep.subr.mxu0 0.0
      %178 = vmatpush1.msra.mxu0 0.0
      %179 = vmatprep.subr.mxu0 0.0
      %180 = vmatpush1.msra.mxu0 0.0
      %181 = vmatprep.subr.mxu0 0.0
      %182 = vmatpush1.msra.mxu0 0.0
      %183 = vmatprep.subr.mxu0 0.0
      %184 = vmatpush1.msra.mxu0 0.0
      %185 = vmatprep.subr.mxu0 0.0
      %186 = vmatpush1.msra.mxu0 0.0
      %187 = vmatprep.subr.mxu0 0.0
      %188 = vmatpush1.msra.mxu0 0.0
      %189 = vmatprep.subr.mxu0 0.0
      %190 = vmatpush1.msra.mxu0 0.0
      %191 = vmatprep.subr.mxu0 0.0
      %192 = vmatpush1.msra.mxu0 0.0
      %193 = vmatprep.subr.mxu0 0.0
      %194 = vmatpush1.msra.mxu0 0.0
      %195 = vmatprep.subr.mxu0 0.0
      %196 = vmatpush1.msra.mxu0 0.0
      %197 = vmatprep.subr.mxu0 0.0
      %198 = vmatpush1.msra.mxu0 0.0
      %199 = vmatprep.subr.mxu0 0.0
      %200 = vmatpush1.msra.mxu0 0.0
      %201 = vmatprep.subr.mxu0 0.0
      %202 = vmatpush1.msra.mxu0 0.0
      %203 = vmatprep.mubr.f32.mxu0 0.0
      %204 = vmatmul.mubr.f32.gmra.mrb[0].mxu0 %v130
      %v205 = vpop.f32.mrb[0].mxu0
      %v206 = vadd.f32 0.0, %v205
      %v207 = vpop.f32.mrb[0].mxu0
      %208 = vmatprep.mubr.f32.mxu0 0.0
      %209 = vmatmul.mubr.f32.gmra.mrb[0].mxu0 %v133
      %v210 = vpop.f32.mrb[0].mxu0
      %v211 = vadd.f32 0.0, %v210
      %v212 = vpop.f32.mrb[0].mxu0
      %213 = vdwg.mxu0
      %v214 = vadd.f32 %v121, %v206
      %v215 = vadd.f32 %v122, %v211
      %v216 = vld [vmem:[%s2] sm:$0x1]
      %v218 = vlaneseq
      %v219 = vshrl.u32 %v218, 7
      %v220 = vsub.s32 0, %v219
      %v221 = vrot.slane %v216, %v220
      %v223 = vadd.f32 %v214, %v221
      %v224 = vadd.f32 %v215, %v221
      %225 = vst.msk [vmem:[#allocation6] sm:$0xff] %vm115, %v223
      %226 = vst.msk [vmem:[#allocation6 + $0x8] sm:$0xff] %vm115, %v224
    $region33: #{tpu_custom_call.1} parent=1 // pred_fallthru
      _
    // Predicated region
    $region34: #{tpu_custom_call.1} parent=1 // pred_check
      _
    $region35: #{tpu_custom_call.1} parent=1 // pred_check_branch
      %228 = sbr.rel (0) target = $region37
    $region36: #{tpu_custom_call.1} parent=1 // pred_region
      %s230 = ssub.s32 256, 256
      %231 = vsyncadd [#allocation5], %s230
      %s232 = sshll.u32 [#allocation6], 4
      %s233 = int_to_ptr.vmem [resolvable:$true] %s232
      %238 = dma.vmem_to_hbm [thread:$0]  %s233, 256, %s5, [#allocation5], 128, 128, 8
    $region37: #{tpu_custom_call.1} parent=1 // pred_fallthru
      _
    // Predicated region
    $region38: #{tpu_custom_call.1} parent=1 // pred_check
      _
    $region39: #{tpu_custom_call.1} parent=1 // pred_check_branch
      %240 = sbr.rel (0) target = $region41
    $region40: #{tpu_custom_call.1} parent=1 // pred_region
      %241 = dma.done [#allocation5], 256
    $region41: #{tpu_custom_call.1} parent=1 // pred_fallthru
      _
    %242 = vsyncpa [#allocation4], 1
    %243 = vsyncpa [#allocation5], 1

</llo_original>
